<compile_context>
chip_gen: v6e
topology: v6e:2x2x1
jax: 0.10.0
libtpu: 0.0.40
codegen_flags: <defaults>
</compile_context>

<pallas_src>
import functools

import jax
import jax.numpy as jnp
from jax.experimental import pallas as pl
from jax.experimental.pallas import tpu as pltpu

INPUT_DIM = 86
HIDDEN_DIM = 128
OUTPUT_DIM = 86

_CHUNK = 512        # rows per in-kernel sub-chunk (MXU/VPU interleave unit)
_MAX_TILE_M = 4096  # VMEM cap: ~24 MB of x/out stream buffers at 3-deep buffering


def _round_up(x, m):
    return ((x + m - 1) // m) * m


def _mlp_kernel(x_ref, w1_ref, b1_ref, w2_ref, b2_ref, w3_ref, b3_ref, o_ref,
                *, chunk, use_bf16):
    """Fused 3-layer MLP over one (tile_m, 86) row tile.

    The tile is processed in `chunk`-row sub-chunks, fully unrolled with
    compile-time slice starts (equivalent to lax.fori_loop(..., unroll=True)
    but with static, aligned offsets), so MXU work of chunk j+1 can co-issue
    with the bias/ReLU/cast VPU epilogue of chunk j.
    """
    w1 = w1_ref[...]
    b1 = b1_ref[...]
    w2 = w2_ref[...]
    b2 = b2_ref[...]
    w3 = w3_ref[...]
    b3 = b3_ref[...]

    tile_m = x_ref.shape[0]
    n_chunks = tile_m // chunk  # tile_m is a multiple of chunk by construction

    for c in range(n_chunks):
        r = c * chunk  # static offset
        x = x_ref[pl.ds(r, chunk), :]
        if use_bf16:
            x = x.astype(jnp.bfloat16)

        h1 = jnp.dot(x, w1, preferred_element_type=jnp.float32) + b1
        h1 = jnp.maximum(h1, 0.0)
        if use_bf16:
            h1 = h1.astype(jnp.bfloat16)

        h2 = jnp.dot(h1, w2, preferred_element_type=jnp.float32) + b2
        h2 = jnp.maximum(h2, 0.0)
        if use_bf16:
            h2 = h2.astype(jnp.bfloat16)

        out = jnp.dot(h2, w3, preferred_element_type=jnp.float32) + b3
        o_ref[pl.ds(r, chunk), :] = out.astype(o_ref.dtype)


def _choose_tile_m(n):
    """Pick rows per grid step.

    Per perf review: few, large steps (tile_m up to 4096) to amortize the
    ~0.35us per-step overhead; keep the grid length even when it is short so
    v7x's two TensorCores get equal step counts; keep tile_m a multiple of 8
    sublanes and of the in-kernel chunk once it is large enough.
    """
    t = min(_MAX_TILE_M, _round_up(max(n, 8), 8))
    if t >= _CHUNK:
        t = _round_up(t, _CHUNK)
    steps = pl.cdiv(n, t)
    if 1 < steps <= 8 and steps % 2 == 1:
        steps += 1
        t = _round_up(pl.cdiv(n, steps), 8)
        if t >= _CHUNK:
            t = _round_up(t, _CHUNK)
    return t


@functools.partial(jax.jit, static_argnames=("tile_m", "use_bf16", "out_dtype"))
def gaussian_refinement_mlp(x, params, tile_m=None, use_bf16=True,
                            out_dtype=jnp.float32):
    """x: (B, G, 86) float32 -> (B, G, 86) out_dtype (default float32).

    out_dtype=jnp.bfloat16 halves writeback bytes (worth ~20% wall on the
    HBM-bound v5e); the default float32 matches the PyTorch module exactly.
    """
    w1, b1, w2, b2, w3, b3 = params
    B, G, D = x.shape
    assert D == INPUT_DIM

    n = B * G
    if tile_m is None:
        tile_m = _choose_tile_m(n)
    assert tile_m % 8 == 0
    chunk = _CHUNK if (tile_m >= _CHUNK and tile_m % _CHUNK == 0) else tile_m

    x2 = x.reshape(n, D)

    # Weights in matmul dtype; biases stay f32 (bias-add/ReLU run in f32).
    wdt = jnp.bfloat16 if use_bf16 else jnp.float32
    w1c = w1.astype(wdt)
    w2c = w2.astype(wdt)
    w3c = w3.astype(wdt)
    b1r = b1.reshape(1, HIDDEN_DIM).astype(jnp.float32)
    b2r = b2.reshape(1, HIDDEN_DIM).astype(jnp.float32)
    b3r = b3.reshape(1, OUTPUT_DIM).astype(jnp.float32)

    steps = pl.cdiv(n, tile_m)
    grid = (steps,)
    full = lambda i: (0, 0)
    row_tile = lambda i: (i, 0)

    # Triple-buffer the non-lane-dense x / out streams when the grid is long
    # enough for it to matter (hides the strided-DMA inefficiency of 86-wide
    # blocks); otherwise keep the default double buffering.
    stream_pipe = pl.Buffered(3) if steps >= 3 else None
    n_stream_bufs = 3 if steps >= 3 else 2

    out_itemsize = jnp.dtype(out_dtype).itemsize
    weight_bytes = ((w1c.size + w2c.size + w3c.size) * jnp.dtype(wdt).itemsize
                    + (b1r.size + b2r.size + b3r.size) * 4)

    # VMEM budget: stream blocks are lane-padded to 128 in VMEM.
    stream_in_bytes = tile_m * 128 * 4
    stream_out_bytes = tile_m * 128 * out_itemsize
    vmem_est = (n_stream_bufs * (stream_in_bytes + stream_out_bytes)
                + 2 * weight_bytes
                + 6 * chunk * HIDDEN_DIM * 4)  # per-chunk h1/h2 temporaries
    vmem_limit = int(min(56 * 1024 * 1024,
                         max(32 * 1024 * 1024, 2 * vmem_est)))

    cost = pl.CostEstimate(
        flops=2 * n * (INPUT_DIM * HIDDEN_DIM
                       + HIDDEN_DIM * HIDDEN_DIM
                       + HIDDEN_DIM * OUTPUT_DIM),
        transcendentals=0,
        bytes_accessed=(n * INPUT_DIM * 4
                        + n * OUTPUT_DIM * out_itemsize
                        + weight_bytes),
    )

    out = pl.pallas_call(
        functools.partial(_mlp_kernel, chunk=chunk, use_bf16=use_bf16),
        out_shape=jax.ShapeDtypeStruct((n, OUTPUT_DIM), out_dtype),
        grid=grid,
        in_specs=[
            pl.BlockSpec((tile_m, INPUT_DIM), row_tile,
                         pipeline_mode=stream_pipe),                 # x row tile
            pl.BlockSpec((INPUT_DIM, HIDDEN_DIM), full),             # w1 (resident)
            pl.BlockSpec((1, HIDDEN_DIM), full),                     # b1
            pl.BlockSpec((HIDDEN_DIM, HIDDEN_DIM), full),            # w2
            pl.BlockSpec((1, HIDDEN_DIM), full),                     # b2
            pl.BlockSpec((HIDDEN_DIM, OUTPUT_DIM), full),            # w3
            pl.BlockSpec((1, OUTPUT_DIM), full),                     # b3
        ],
        out_specs=pl.BlockSpec((tile_m, OUTPUT_DIM), row_tile,
                               pipeline_mode=stream_pipe),
        compiler_params=pltpu.CompilerParams(
            dimension_semantics=("parallel",),
            vmem_limit_bytes=vmem_limit),
        cost_estimate=cost,
    )(x2, w1c, b1r, w2c, b2r, w3c, b3r)

    return out.reshape(B, G, OUTPUT_DIM)


def init_params(key):
    """Deterministic init mimicking nn.Linear's uniform(-1/sqrt(fan_in), +)."""
    ks = jax.random.split(key, 6)

    def linear(kw, kb, fan_in, fan_out):
        bound = 1.0 / jnp.sqrt(fan_in)
        w = jax.random.uniform(kw, (fan_in, fan_out), jnp.float32, -bound, bound)
        b = jax.random.uniform(kb, (fan_out,), jnp.float32, -bound, bound)
        return w, b

    w1, b1 = linear(ks[0], ks[1], INPUT_DIM, HIDDEN_DIM)
    w2, b2 = linear(ks[2], ks[3], HIDDEN_DIM, HIDDEN_DIM)
    w3, b3 = linear(ks[4], ks[5], HIDDEN_DIM, OUTPUT_DIM)
    return (w1, b1, w2, b2, w3, b3)


def reference_mlp(x, params):
    w1, b1, w2, b2, w3, b3 = params
    h = jnp.maximum(x @ w1 + b1, 0.0)
    h = jnp.maximum(h @ w2 + b2, 0.0)
    return h @ w3 + b3


if __name__ == "__main__":
    key = jax.random.PRNGKey(0)
    k_params, k_x1, k_x2 = jax.random.split(key, 3)
    params = init_params(k_params)

    # Case 1: exact-f32 path, single grid step / single chunk.
    B, G = 2, 8
    x = jax.random.normal(k_x1, (B, G, INPUT_DIM), dtype=jnp.float32)
    out_f32 = jax.block_until_ready(
        gaussian_refinement_mlp(x, params, use_bf16=False))
    ref = reference_mlp(x, params)
    assert out_f32.shape == (B, G, OUTPUT_DIM)
    assert jnp.allclose(out_f32, ref, atol=1e-4, rtol=1e-4), "f32 mismatch vs reference"

    # Case 2: default bf16 fast path, ragged row count (B*G = 21).
    B2, G2 = 3, 7
    x2 = jax.random.normal(k_x2, (B2, G2, INPUT_DIM), dtype=jnp.float32)
    out_bf16 = jax.block_until_ready(
        gaussian_refinement_mlp(x2, params, use_bf16=True))
    ref2 = reference_mlp(x2, params)
    assert out_bf16.shape == (B2, G2, OUTPUT_DIM)
    max_err = float(jnp.max(jnp.abs(out_bf16 - ref2)))
    assert max_err < 5e-2, f"bf16 path error too large: {max_err}"

    # Case 3: multi-step grid (3 steps -> Buffered(3) streams), multi-chunk
    # unrolled body (tile_m=1024 -> 2 chunks of 512), ragged last grid block.
    B3, G3 = 4, 600
    x3 = jax.random.normal(jax.random.PRNGKey(1), (B3, G3, INPUT_DIM),
                           dtype=jnp.float32)
    out3 = jax.block_until_ready(
        gaussian_refinement_mlp(x3, params, tile_m=1024, use_bf16=True))
    ref3 = reference_mlp(x3, params)
    assert out3.shape == (B3, G3, OUTPUT_DIM)
    max_err3 = float(jnp.max(jnp.abs(out3 - ref3)))
    assert max_err3 < 1e-1, f"bf16 multi-step error too large: {max_err3}"

    print("KERNEL_OK")
</pallas_src>

<mosaic_0001>
module attributes {stable_mosaic.version = 11 : i64} {
  func.func @_mlp_kernel(%arg0: i32, %arg1: memref<16x86xf32, #tpu.memory_space<vmem>>, %arg2: memref<86x128xf32, #tpu.memory_space<vmem>>, %arg3: memref<1x128xf32, #tpu.memory_space<vmem>>, %arg4: memref<128x128xf32, #tpu.memory_space<vmem>>, %arg5: memref<1x128xf32, #tpu.memory_space<vmem>>, %arg6: memref<128x86xf32, #tpu.memory_space<vmem>>, %arg7: memref<1x86xf32, #tpu.memory_space<vmem>>, %arg8: memref<16x86xf32, #tpu.memory_space<vmem>>) attributes {dimension_semantics = [#tpu.dimension_semantics<parallel>], iteration_bounds = array<i64: 1>, scalar_prefetch = 0 : i64, scratch_operands = 0 : i64, tpu.core_type = #tpu.core_type<tc>, window_params = [{transform_indices = @transform_0, window_bounds = array<i64: 16, 86>}, {pipeline_mode = #tpu.pipeline_mode<synchronous>, transform_indices = @transform_1, window_bounds = array<i64: 86, 128>}, {pipeline_mode = #tpu.pipeline_mode<synchronous>, transform_indices = @transform_2, window_bounds = array<i64: 1, 128>}, {pipeline_mode = #tpu.pipeline_mode<synchronous>, transform_indices = @transform_3, window_bounds = array<i64: 128, 128>}, {pipeline_mode = #tpu.pipeline_mode<synchronous>, transform_indices = @transform_4, window_bounds = array<i64: 1, 128>}, {pipeline_mode = #tpu.pipeline_mode<synchronous>, transform_indices = @transform_5, window_bounds = array<i64: 128, 86>}, {pipeline_mode = #tpu.pipeline_mode<synchronous>, transform_indices = @transform_6, window_bounds = array<i64: 1, 86>}, {transform_indices = @transform_7, window_bounds = array<i64: 16, 86>}]} {
    %c0 = arith.constant 0 : index
    %c0_0 = arith.constant 0 : index
    %0 = vector.load %arg2[%c0, %c0_0] : memref<86x128xf32, #tpu.memory_space<vmem>>, vector<86x128xf32>
    %c0_1 = arith.constant 0 : index
    %c0_2 = arith.constant 0 : index
    %1 = vector.load %arg3[%c0_1, %c0_2] : memref<1x128xf32, #tpu.memory_space<vmem>>, vector<1x128xf32>
    %c0_3 = arith.constant 0 : index
    %c0_4 = arith.constant 0 : index
    %2 = vector.load %arg4[%c0_3, %c0_4] : memref<128x128xf32, #tpu.memory_space<vmem>>, vector<128x128xf32>
    %c0_5 = arith.constant 0 : index
    %c0_6 = arith.constant 0 : index
    %3 = vector.load %arg5[%c0_5, %c0_6] : memref<1x128xf32, #tpu.memory_space<vmem>>, vector<1x128xf32>
    %c0_7 = arith.constant 0 : index
    %c0_8 = arith.constant 0 : index
    %4 = vector.load %arg6[%c0_7, %c0_8] : memref<128x86xf32, #tpu.memory_space<vmem>>, vector<128x86xf32>
    %c0_9 = arith.constant 0 : index
    %c0_10 = arith.constant 0 : index
    %5 = vector.load %arg7[%c0_9, %c0_10] : memref<1x86xf32, #tpu.memory_space<vmem>>, vector<1x86xf32>
    %c0_11 = arith.constant 0 : index
    %c0_12 = arith.constant 0 : index
    %6 = vector.load %arg1[%c0_11, %c0_12] : memref<16x86xf32, #tpu.memory_space<vmem>>, vector<16x86xf32>
    %cst = arith.constant dense<0.000000e+00> : vector<16x128xf32>
    %7 = tpu.matmul %6, %0, %cst {dimension_numbers = #tpu.dot_dimension_numbers<[1], [0], [0], [1], [0, 0, 1, 1], [], []>} : vector<16x86xf32>, vector<86x128xf32>, vector<16x128xf32> -> vector<16x128xf32>
    %8 = vector.broadcast %1 : vector<1x128xf32> to vector<16x128xf32>
    %9 = arith.addf %7, %8 : vector<16x128xf32>
    %cst_13 = arith.constant 0.000000e+00 : f32
    %10 = vector.broadcast %cst_13 : f32 to vector<16x128xf32>
    %11 = arith.maximumf %9, %10 : vector<16x128xf32>
    %cst_14 = arith.constant dense<0.000000e+00> : vector<16x128xf32>
    %12 = tpu.matmul %11, %2, %cst_14 {dimension_numbers = #tpu.dot_dimension_numbers<[1], [0], [0], [1], [0, 0, 1, 1], [], []>} : vector<16x128xf32>, vector<128x128xf32>, vector<16x128xf32> -> vector<16x128xf32>
    %13 = vector.broadcast %3 : vector<1x128xf32> to vector<16x128xf32>
    %14 = arith.addf %12, %13 : vector<16x128xf32>
    %cst_15 = arith.constant 0.000000e+00 : f32
    %15 = vector.broadcast %cst_15 : f32 to vector<16x128xf32>
    %16 = arith.maximumf %14, %15 : vector<16x128xf32>
    %cst_16 = arith.constant dense<0.000000e+00> : vector<16x86xf32>
    %17 = tpu.matmul %16, %4, %cst_16 {dimension_numbers = #tpu.dot_dimension_numbers<[1], [0], [0], [1], [0, 0, 1, 1], [], []>} : vector<16x128xf32>, vector<128x86xf32>, vector<16x86xf32> -> vector<16x86xf32>
    %18 = vector.broadcast %5 : vector<1x86xf32> to vector<16x86xf32>
    %19 = arith.addf %17, %18 : vector<16x86xf32>
    %c0_17 = arith.constant 0 : index
    %c0_18 = arith.constant 0 : index
    %20 = vector.load %arg8[%c0_17, %c0_18] : memref<16x86xf32, #tpu.memory_space<vmem>>, vector<16x86xf32>
    tpu.vector_store %arg8[%c0_17, %c0_18], %19 {strides = array<i32>} : memref<16x86xf32, #tpu.memory_space<vmem>>, vector<16x86xf32>,
    return
  }
  func.func @transform_0(%arg0: i32) -> (i32, i32) {
    %c0_i32 = arith.constant 0 : i32
    %c0_i32_0 = arith.constant 0 : i32
    return %arg0, %c0_i32 : i32, i32
  }
  func.func @transform_1(%arg0: i32) -> (i32, i32) {
    %c0_i32 = arith.constant 0 : i32
    %c0_i32_0 = arith.constant 0 : i32
    %c0_i32_1 = arith.constant 0 : i32
    return %c0_i32, %c0_i32_0 : i32, i32
  }
  func.func @transform_2(%arg0: i32) -> (i32, i32) {
    %c0_i32 = arith.constant 0 : i32
    %c0_i32_0 = arith.constant 0 : i32
    %c0_i32_1 = arith.constant 0 : i32
    return %c0_i32, %c0_i32_0 : i32, i32
  }
  func.func @transform_3(%arg0: i32) -> (i32, i32) {
    %c0_i32 = arith.constant 0 : i32
    %c0_i32_0 = arith.constant 0 : i32
    %c0_i32_1 = arith.constant 0 : i32
    return %c0_i32, %c0_i32_0 : i32, i32
  }
  func.func @transform_4(%arg0: i32) -> (i32, i32) {
    %c0_i32 = arith.constant 0 : i32
    %c0_i32_0 = arith.constant 0 : i32
    %c0_i32_1 = arith.constant 0 : i32
    return %c0_i32, %c0_i32_0 : i32, i32
  }
  func.func @transform_5(%arg0: i32) -> (i32, i32) {
    %c0_i32 = arith.constant 0 : i32
    %c0_i32_0 = arith.constant 0 : i32
    %c0_i32_1 = arith.constant 0 : i32
    return %c0_i32, %c0_i32_0 : i32, i32
  }
  func.func @transform_6(%arg0: i32) -> (i32, i32) {
    %c0_i32 = arith.constant 0 : i32
    %c0_i32_0 = arith.constant 0 : i32
    %c0_i32_1 = arith.constant 0 : i32
    return %c0_i32, %c0_i32_0 : i32, i32
  }
  func.func @transform_7(%arg0: i32) -> (i32, i32) {
    %c0_i32 = arith.constant 0 : i32
    %c0_i32_0 = arith.constant 0 : i32
    return %arg0, %c0_i32 : i32, i32
  }
}

</mosaic_0001>

<llo_original>
// kernel: gaussian_refinement_mlp.1
$region0: #{gaussian_refinement_mlp.1}
  #allocation0 [shape = 'u32[]', space=smem, size = 0x4, offset = 0x4, fixed_abs, tag = 'smem constant byte address 0x4 - core index']
  #allocation1 [shape = 'u32[144,128]{1,0:T(1,128)}', space=vmem, size = 0x12000, scoped, tag = 'internal scratch']
  %s0 = inlined_call_operand.hbm [shape: f32[16,86], index: 0, kind: input, shape index: {}]
  %s1 = inlined_call_operand.vmem [shape: f32[86,128], index: 1, kind: input, shape index: {}]
  %s2 = inlined_call_operand.vmem [shape: f32[1,128], index: 2, kind: input, shape index: {}]
  %s3 = inlined_call_operand.vmem [shape: f32[128,128], index: 3, kind: input, shape index: {}]
  %s4 = inlined_call_operand.vmem [shape: f32[1,128], index: 4, kind: input, shape index: {}]
  %s5 = inlined_call_operand.vmem [shape: f32[128,86], index: 5, kind: input, shape index: {}]
  %s6 = inlined_call_operand.vmem [shape: f32[1,86], index: 6, kind: input, shape index: {}]
  %s7 = inlined_call_operand.hbm [shape: f32[16,86], index: 7, kind: output, shape index: {}]
  %s8 = sld [smem:[#allocation0]]
  $region42: #{gaussian_refinement_mlp.1} parent=0
    _
  %s10 = ssub.s32 1, %s8
  %s11 = scalar_select 0, %s10, %s8
  $region1: #{gaussian_refinement_mlp.1} parent=0
    #allocation2 [shape = 'u8[8192]{0}', space=vmem, size = 0x2000, scoped, tag = 'input window, operand 0, single buffered']
    #allocation3 [shape = 's32[1]{0}', space=sflag, size = 0x4, scoped, tag = 'scoped memory for gaussian_refinement_mlp.1']
    #allocation4 [shape = 's32[1]{0}', space=sflag, size = 0x4, scoped, tag = 'scoped memory for gaussian_refinement_mlp.1']
    #allocation5 [shape = 'u8[8192]{0}', space=vmem, size = 0x2000, scoped, tag = 'output window, operand 0, single buffered']
    %12 = vsyncpa [#allocation3], 0
    %13 = vsyncpa [#allocation4], 0
    // Predicated region
    $region2: #{gaussian_refinement_mlp.1} parent=1 // pred_check
      _
    $region3: #{gaussian_refinement_mlp.1} parent=1 // pred_check_branch
      %15 = sbr.rel (0) target = $region5
    $region4: #{gaussian_refinement_mlp.1} parent=1 // pred_region
      %s17 = ssub.s32 256, 256
      %18 = vsyncadd [#allocation3], %s17
      %s19 = sshll.u32 [#allocation2], 4
      %s20 = int_to_ptr.vmem [resolvable:$true] %s19
      %25 = dma.hbm_to_vmem [thread:$0]  %s0, 256, %s20, [#allocation3], 128, 128, 8
    $region5: #{gaussian_refinement_mlp.1} parent=1 // pred_fallthru
      _
    // Predicated region
    $region6: #{gaussian_refinement_mlp.1} parent=1 // pred_check
      _
    $region7: #{gaussian_refinement_mlp.1} parent=1 // pred_check_branch
      %27 = sbr.rel (0) target = $region9
    $region8: #{gaussian_refinement_mlp.1} parent=1 // pred_region
      _
    $region9: #{gaussian_refinement_mlp.1} parent=1 // pred_fallthru
      _
    // Predicated region
    $region10: #{gaussian_refinement_mlp.1} parent=1 // pred_check
      _
    $region11: #{gaussian_refinement_mlp.1} parent=1 // pred_check_branch
      %29 = sbr.rel (0) target = $region13
    $region12: #{gaussian_refinement_mlp.1} parent=1 // pred_region
      _
    $region13: #{gaussian_refinement_mlp.1} parent=1 // pred_fallthru
      _
    // Predicated region
    $region14: #{gaussian_refinement_mlp.1} parent=1 // pred_check
      _
    $region15: #{gaussian_refinement_mlp.1} parent=1 // pred_check_branch
      %31 = sbr.rel (0) target = $region17
    $region16: #{gaussian_refinement_mlp.1} parent=1 // pred_region
      _
    $region17: #{gaussian_refinement_mlp.1} parent=1 // pred_fallthru
      _
    // Predicated region
    $region18: #{gaussian_refinement_mlp.1} parent=1 // pred_check
      _
    $region19: #{gaussian_refinement_mlp.1} parent=1 // pred_check_branch
      %33 = sbr.rel (0) target = $region21
    $region20: #{gaussian_refinement_mlp.1} parent=1 // pred_region
      _
    $region21: #{gaussian_refinement_mlp.1} parent=1 // pred_fallthru
      _
    // Predicated region
    $region22: #{gaussian_refinement_mlp.1} parent=1 // pred_check
      _
    $region23: #{gaussian_refinement_mlp.1} parent=1 // pred_check_branch
      %35 = sbr.rel (0) target = $region25
    $region24: #{gaussian_refinement_mlp.1} parent=1 // pred_region
      _
    $region25: #{gaussian_refinement_mlp.1} parent=1 // pred_fallthru
      _
    // Predicated region
    $region26: #{gaussian_refinement_mlp.1} parent=1 // pred_check
      _
    $region27: #{gaussian_refinement_mlp.1} parent=1 // pred_check_branch
      %37 = sbr.rel (0) target = $region29
    $region28: #{gaussian_refinement_mlp.1} parent=1 // pred_region
      _
    $region29: #{gaussian_refinement_mlp.1} parent=1 // pred_fallthru
      _
    // Predicated region
    $region30: #{gaussian_refinement_mlp.1} parent=1 // pred_check
      _
    $region31: #{gaussian_refinement_mlp.1} parent=1 // pred_check_branch
      %39 = sbr.rel (0) target = $region33
    $region32: #{gaussian_refinement_mlp.1} parent=1 // pred_region
      %40 = dma.done [#allocation3], 256
    $region33: #{gaussian_refinement_mlp.1} parent=1 // pred_fallthru
      _
    %v41 = vld [vmem:[%s1] sm:$0xff]
    %v42 = vld [vmem:[%s1 + $0x8] sm:$0xff]
    %v43 = vld [vmem:[%s1 + $0x10] sm:$0xff]
    %v44 = vld [vmem:[%s1 + $0x18] sm:$0xff]
    %v45 = vld [vmem:[%s1 + $0x20] sm:$0xff]
    %v46 = vld [vmem:[%s1 + $0x28] sm:$0xff]
    %v47 = vld [vmem:[%s1 + $0x30] sm:$0xff]
    %v48 = vld [vmem:[%s1 + $0x38] sm:$0xff]
    %v49 = vld [vmem:[%s1 + $0x40] sm:$0xff]
    %v50 = vld [vmem:[%s1 + $0x48] sm:$0xff]
    %v51 = vld [vmem:[%s1 + $0x50] sm:$0x3f]
    %v52 = vld [vmem:[%s2] sm:$0x1]
    %v53 = vld [vmem:[%s3] sm:$0xff]
    %v54 = vld [vmem:[%s3 + $0x8] sm:$0xff]
    %v55 = vld [vmem:[%s3 + $0x10] sm:$0xff]
    %v56 = vld [vmem:[%s3 + $0x18] sm:$0xff]
    %v57 = vld [vmem:[%s3 + $0x20] sm:$0xff]
    %v58 = vld [vmem:[%s3 + $0x28] sm:$0xff]
    %v59 = vld [vmem:[%s3 + $0x30] sm:$0xff]
    %v60 = vld [vmem:[%s3 + $0x38] sm:$0xff]
    %v61 = vld [vmem:[%s3 + $0x40] sm:$0xff]
    %v62 = vld [vmem:[%s3 + $0x48] sm:$0xff]
    %v63 = vld [vmem:[%s3 + $0x50] sm:$0xff]
    %v64 = vld [vmem:[%s3 + $0x58] sm:$0xff]
    %v65 = vld [vmem:[%s3 + $0x60] sm:$0xff]
    %v66 = vld [vmem:[%s3 + $0x68] sm:$0xff]
    %v67 = vld [vmem:[%s3 + $0x70] sm:$0xff]
    %v68 = vld [vmem:[%s3 + $0x78] sm:$0xff]
    %v69 = vld [vmem:[%s4] sm:$0x1]
    %v70 = vld [vmem:[%s5] sm:$0xff]
    %v71 = vld [vmem:[%s5 + $0x8] sm:$0xff]
    %v72 = vld [vmem:[%s5 + $0x10] sm:$0xff]
    %v73 = vld [vmem:[%s5 + $0x18] sm:$0xff]
    %v74 = vld [vmem:[%s5 + $0x20] sm:$0xff]
    %v75 = vld [vmem:[%s5 + $0x28] sm:$0xff]
    %v76 = vld [vmem:[%s5 + $0x30] sm:$0xff]
    %v77 = vld [vmem:[%s5 + $0x38] sm:$0xff]
    %v78 = vld [vmem:[%s5 + $0x40] sm:$0xff]
    %v79 = vld [vmem:[%s5 + $0x48] sm:$0xff]
    %v80 = vld [vmem:[%s5 + $0x50] sm:$0xff]
    %v81 = vld [vmem:[%s5 + $0x58] sm:$0xff]
    %v82 = vld [vmem:[%s5 + $0x60] sm:$0xff]
    %v83 = vld [vmem:[%s5 + $0x68] sm:$0xff]
    %v84 = vld [vmem:[%s5 + $0x70] sm:$0xff]
    %v85 = vld [vmem:[%s5 + $0x78] sm:$0xff]
    %v86 = vld [vmem:[%s6] sm:$0x1]
    %v87 = vld [vmem:[#allocation2] sm:$0xff]
    %v88 = vld [vmem:[#allocation2 + $0x8] sm:$0xff]
    %v90 = vlaneseq
    %v91 = vshrl.u32 %v90, 7
    %v92 = vsub.s32 0, %v91
    %v93 = vrot.slane %v52, %v92
    %vm95 = vcmask 703488
    %v97 = vsel %vm95, %v87, 0
    %v100 = vsel %vm95, %v88, 0
    %vm102 = vcmask 1045504
    %v104 = vsel %vm102, %v51, 0
    %106 = vmatprep.subr.mxu0 0.0
    %107 = vmatpush1.msra.mxu0 0.0
    %108 = vmatprep.subr.mxu0 0.0
    %109 = vmatpush1.msra.mxu0 0.0
    %110 = vmatprep.subr.mxu0 0.0
    %111 = vmatpush1.msra.mxu0 0.0
    %112 = vmatprep.subr.mxu0 0.0
    %113 = vmatpush1.msra.mxu0 0.0
    %114 = vmatprep.subr.mxu0 0.0
    %115 = vmatpush1.msra.mxu0 0.0
    %116 = vmatprep.subr.mxu0 0.0
    %117 = vmatpush1.msra.mxu0 %v104
    %118 = vmatprep.subr.mxu0 0.0
    %119 = vmatpush1.msra.mxu0 %v50
    %120 = vmatprep.subr.mxu0 0.0
    %121 = vmatpush1.msra.mxu0 %v49
    %122 = vmatprep.subr.mxu0 0.0
    %123 = vmatpush1.msra.mxu0 %v48
    %124 = vmatprep.subr.mxu0 0.0
    %125 = vmatpush1.msra.mxu0 %v47
    %126 = vmatprep.subr.mxu0 0.0
    %127 = vmatpush1.msra.mxu0 %v46
    %128 = vmatprep.subr.mxu0 0.0
    %129 = vmatpush1.msra.mxu0 %v45
    %130 = vmatprep.subr.mxu0 0.0
    %131 = vmatpush1.msra.mxu0 %v44
    %132 = vmatprep.subr.mxu0 0.0
    %133 = vmatpush1.msra.mxu0 %v43
    %134 = vmatprep.subr.mxu0 0.0
    %135 = vmatpush1.msra.mxu0 %v42
    %136 = vmatprep.subr.mxu0 0.0
    %137 = vmatpush1.msra.mxu0 %v41
    %138 = vmatprep.subr.mxu0 0.0
    %139 = vmatpush2.msra.mxu0 0.0
    %140 = vmatprep.subr.mxu0 0.0
    %141 = vmatpush2.msra.mxu0 0.0
    %142 = vmatprep.subr.mxu0 0.0
    %143 = vmatpush2.msra.mxu0 0.0
    %144 = vmatprep.subr.mxu0 0.0
    %145 = vmatpush2.msra.mxu0 0.0
    %146 = vmatprep.subr.mxu0 0.0
    %147 = vmatpush2.msra.mxu0 0.0
    %148 = vmatprep.subr.mxu0 0.0
    %149 = vmatpush2.msra.mxu0 0.0
    %150 = vmatprep.subr.mxu0 0.0
    %151 = vmatpush2.msra.mxu0 0.0
    %152 = vmatprep.subr.mxu0 0.0
    %153 = vmatpush2.msra.mxu0 0.0
    %154 = vmatprep.subr.mxu0 0.0
    %155 = vmatpush2.msra.mxu0 0.0
    %156 = vmatprep.subr.mxu0 0.0
    %157 = vmatpush2.msra.mxu0 0.0
    %158 = vmatprep.subr.mxu0 0.0
    %159 = vmatpush2.msra.mxu0 0.0
    %160 = vmatprep.subr.mxu0 0.0
    %161 = vmatpush2.msra.mxu0 0.0
    %162 = vmatprep.subr.mxu0 0.0
    %163 = vmatpush2.msra.mxu0 0.0
    %164 = vmatprep.subr.mxu0 0.0
    %165 = vmatpush2.msra.mxu0 0.0
    %166 = vmatprep.subr.mxu0 0.0
    %167 = vmatpush2.msra.mxu0 0.0
    %168 = vmatprep.subr.mxu0 0.0
    %169 = vmatpush2.msra.mxu0 0.0
    %170 = vmatprep.mubr.f32.mxu0 0.0
    %171 = vmatmul.mubr.f32.gmra.mxu0 %v97
    %v172 = vpop.f32.mrf.mxu0
    %v173 = vadd.f32 %v93, %v172
    %v174 = vpop.f32.mrf.mxu0
    %175 = vmatprep.mubr.f32.mxu0 0.0
    %176 = vmatmul.mubr.f32.gmra.mxu0 %v100
    %v177 = vpop.f32.mrf.mxu0
    %v178 = vadd.f32 %v93, %v177
    %v179 = vpop.f32.mrf.mxu0
    %180 = vdwg.mxu0
    %v181 = vmax.f32 %v173, 0.0
    %v182 = vmax.f32 %v178, 0.0
    %v184 = vlaneseq
    %v185 = vshrl.u32 %v184, 7
    %v186 = vsub.s32 0, %v185
    %v187 = vrot.slane %v69, %v186
    %189 = vmatprep.subr.mxu0 0.0
    %190 = vmatpush1.msra.mxu0 %v68
    %191 = vmatprep.subr.mxu0 0.0
    %192 = vmatpush1.msra.mxu0 %v67
    %193 = vmatprep.subr.mxu0 0.0
    %194 = vmatpush1.msra.mxu0 %v66
    %195 = vmatprep.subr.mxu0 0.0
    %196 = vmatpush1.msra.mxu0 %v65
    %197 = vmatprep.subr.mxu0 0.0
    %198 = vmatpush1.msra.mxu0 %v64
    %199 = vmatprep.subr.mxu0 0.0
    %200 = vmatpush1.msra.mxu0 %v63
    %201 = vmatprep.subr.mxu0 0.0
    %202 = vmatpush1.msra.mxu0 %v62
    %203 = vmatprep.subr.mxu0 0.0
    %204 = vmatpush1.msra.mxu0 %v61
    %205 = vmatprep.subr.mxu0 0.0
    %206 = vmatpush1.msra.mxu0 %v60
    %207 = vmatprep.subr.mxu0 0.0
    %208 = vmatpush1.msra.mxu0 %v59
    %209 = vmatprep.subr.mxu0 0.0
    %210 = vmatpush1.msra.mxu0 %v58
    %211 = vmatprep.subr.mxu0 0.0
    %212 = vmatpush1.msra.mxu0 %v57
    %213 = vmatprep.subr.mxu0 0.0
    %214 = vmatpush1.msra.mxu0 %v56
    %215 = vmatprep.subr.mxu0 0.0
    %216 = vmatpush1.msra.mxu0 %v55
    %217 = vmatprep.subr.mxu0 0.0
    %218 = vmatpush1.msra.mxu0 %v54
    %219 = vmatprep.subr.mxu0 0.0
    %220 = vmatpush1.msra.mxu0 %v53
    %221 = vmatprep.subr.mxu0 0.0
    %222 = vmatpush2.msra.mxu0 0.0
    %223 = vmatprep.subr.mxu0 0.0
    %224 = vmatpush2.msra.mxu0 0.0
    %225 = vmatprep.subr.mxu0 0.0
    %226 = vmatpush2.msra.mxu0 0.0
    %227 = vmatprep.subr.mxu0 0.0
    %228 = vmatpush2.msra.mxu0 0.0
    %229 = vmatprep.subr.mxu0 0.0
    %230 = vmatpush2.msra.mxu0 0.0
    %231 = vmatprep.subr.mxu0 0.0
    %232 = vmatpush2.msra.mxu0 0.0
    %233 = vmatprep.subr.mxu0 0.0
    %234 = vmatpush2.msra.mxu0 0.0
    %235 = vmatprep.subr.mxu0 0.0
    %236 = vmatpush2.msra.mxu0 0.0
    %237 = vmatprep.subr.mxu0 0.0
    %238 = vmatpush2.msra.mxu0 0.0
    %239 = vmatprep.subr.mxu0 0.0
    %240 = vmatpush2.msra.mxu0 0.0
    %241 = vmatprep.subr.mxu0 0.0
    %242 = vmatpush2.msra.mxu0 0.0
    %243 = vmatprep.subr.mxu0 0.0
    %244 = vmatpush2.msra.mxu0 0.0
    %245 = vmatprep.subr.mxu0 0.0
    %246 = vmatpush2.msra.mxu0 0.0
    %247 = vmatprep.subr.mxu0 0.0
    %248 = vmatpush2.msra.mxu0 0.0
    %249 = vmatprep.subr.mxu0 0.0
    %250 = vmatpush2.msra.mxu0 0.0
    %251 = vmatprep.subr.mxu0 0.0
    %252 = vmatpush2.msra.mxu0 0.0
    %253 = vmatprep.mubr.f32.mxu0 0.0
    %254 = vmatmul.mubr.f32.gmra.mxu0 %v181
    %v255 = vpop.f32.mrf.mxu0
    %v256 = vadd.f32 %v187, %v255
    %v257 = vpop.f32.mrf.mxu0
    %258 = vmatprep.mubr.f32.mxu0 0.0
    %259 = vmatmul.mubr.f32.gmra.mxu0 %v182
    %v260 = vpop.f32.mrf.mxu0
    %v261 = vadd.f32 %v187, %v260
    %v262 = vpop.f32.mrf.mxu0
    %263 = vdwg.mxu0
    %v264 = vmax.f32 %v256, 0.0
    %v265 = vmax.f32 %v261, 0.0
    %v267 = vlaneseq
    %v268 = vshrl.u32 %v267, 7
    %v269 = vsub.s32 0, %v268
    %v270 = vrot.slane %v86, %v269
    %272 = vmatprep.subr.mxu0 0.0
    %273 = vmatpush1.msra.mxu0 %v85
    %274 = vmatprep.subr.mxu0 0.0
    %275 = vmatpush1.msra.mxu0 %v84
    %276 = vmatprep.subr.mxu0 0.0
    %277 = vmatpush1.msra.mxu0 %v83
    %278 = vmatprep.subr.mxu0 0.0
    %279 = vmatpush1.msra.mxu0 %v82
    %280 = vmatprep.subr.mxu0 0.0
    %281 = vmatpush1.msra.mxu0 %v81
    %282 = vmatprep.subr.mxu0 0.0
    %283 = vmatpush1.msra.mxu0 %v80
    %284 = vmatprep.subr.mxu0 0.0
    %285 = vmatpush1.msra.mxu0 %v79
    %286 = vmatprep.subr.mxu0 0.0
    %287 = vmatpush1.msra.mxu0 %v78
    %288 = vmatprep.subr.mxu0 0.0
    %289 = vmatpush1.msra.mxu0 %v77
    %290 = vmatprep.subr.mxu0 0.0
    %291 = vmatpush1.msra.mxu0 %v76
    %292 = vmatprep.subr.mxu0 0.0
    %293 = vmatpush1.msra.mxu0 %v75
    %294 = vmatprep.subr.mxu0 0.0
    %295 = vmatpush1.msra.mxu0 %v74
    %296 = vmatprep.subr.mxu0 0.0
    %297 = vmatpush1.msra.mxu0 %v73
    %298 = vmatprep.subr.mxu0 0.0
    %299 = vmatpush1.msra.mxu0 %v72
    %300 = vmatprep.subr.mxu0 0.0
    %301 = vmatpush1.msra.mxu0 %v71
    %302 = vmatprep.subr.mxu0 0.0
    %303 = vmatpush1.msra.mxu0 %v70
    %304 = vmatprep.subr.mxu0 0.0
    %305 = vmatpush2.msra.mxu0 0.0
    %306 = vmatprep.subr.mxu0 0.0
    %307 = vmatpush2.msra.mxu0 0.0
    %308 = vmatprep.subr.mxu0 0.0
    %309 = vmatpush2.msra.mxu0 0.0
    %310 = vmatprep.subr.mxu0 0.0
    %311 = vmatpush2.msra.mxu0 0.0
    %312 = vmatprep.subr.mxu0 0.0
    %313 = vmatpush2.msra.mxu0 0.0
    %314 = vmatprep.subr.mxu0 0.0
    %315 = vmatpush2.msra.mxu0 0.0
    %316 = vmatprep.subr.mxu0 0.0
    %317 = vmatpush2.msra.mxu0 0.0
    %318 = vmatprep.subr.mxu0 0.0
    %319 = vmatpush2.msra.mxu0 0.0
    %320 = vmatprep.subr.mxu0 0.0
    %321 = vmatpush2.msra.mxu0 0.0
    %322 = vmatprep.subr.mxu0 0.0
    %323 = vmatpush2.msra.mxu0 0.0
    %324 = vmatprep.subr.mxu0 0.0
    %325 = vmatpush2.msra.mxu0 0.0
    %326 = vmatprep.subr.mxu0 0.0
    %327 = vmatpush2.msra.mxu0 0.0
    %328 = vmatprep.subr.mxu0 0.0
    %329 = vmatpush2.msra.mxu0 0.0
    %330 = vmatprep.subr.mxu0 0.0
    %331 = vmatpush2.msra.mxu0 0.0
    %332 = vmatprep.subr.mxu0 0.0
    %333 = vmatpush2.msra.mxu0 0.0
    %334 = vmatprep.subr.mxu0 0.0
    %335 = vmatpush2.msra.mxu0 0.0
    %336 = vmatprep.mubr.f32.mxu0 0.0
    %337 = vmatmul.mubr.f32.gmra.mxu0 %v264
    %v338 = vpop.f32.mrf.mxu0
    %v339 = vadd.f32 %v270, %v338
    %v340 = vpop.f32.mrf.mxu0
    %341 = vmatprep.mubr.f32.mxu0 0.0
    %342 = vmatmul.mubr.f32.gmra.mxu0 %v265
    %v343 = vpop.f32.mrf.mxu0
    %v344 = vadd.f32 %v270, %v343
    %v345 = vpop.f32.mrf.mxu0
    %346 = vdwg.mxu0
    %347 = vst.msk [vmem:[#allocation5] sm:$0xff] %vm95, %v339
    %348 = vst.msk [vmem:[#allocation5 + $0x8] sm:$0xff] %vm95, %v344
    // Predicated region
    $region34: #{gaussian_refinement_mlp.1} parent=1 // pred_check
      _
    $region35: #{gaussian_refinement_mlp.1} parent=1 // pred_check_branch
      %350 = sbr.rel (0) target = $region37
    $region36: #{gaussian_refinement_mlp.1} parent=1 // pred_region
      %s352 = ssub.s32 256, 256
      %353 = vsyncadd [#allocation4], %s352
      %s354 = sshll.u32 [#allocation5], 4
      %s355 = int_to_ptr.vmem [resolvable:$true] %s354
      %360 = dma.vmem_to_hbm [thread:$0]  %s355, 256, %s7, [#allocation4], 128, 128, 8
    $region37: #{gaussian_refinement_mlp.1} parent=1 // pred_fallthru
      _
    // Predicated region
    $region38: #{gaussian_refinement_mlp.1} parent=1 // pred_check
      _
    $region39: #{gaussian_refinement_mlp.1} parent=1 // pred_check_branch
      %362 = sbr.rel (0) target = $region41
    $region40: #{gaussian_refinement_mlp.1} parent=1 // pred_region
      %363 = dma.done [#allocation4], 256
    $region41: #{gaussian_refinement_mlp.1} parent=1 // pred_fallthru
      _
    %364 = vsyncpa [#allocation3], 1
    %365 = vsyncpa [#allocation4], 1

</llo_original>
